<compile_context>
chip_gen: v5e
topology: v5e:2x2
jax: 0.10.0
libtpu: 0.0.40
codegen_flags: <defaults>
</compile_context>

<pallas_src>
import functools

import jax
import jax.numpy as jnp
from jax.experimental import pallas as pl
from jax.experimental.pallas import tpu as pltpu

HP = 128  # lane/sublane-dense hidden width (neurons = 32, padded to 128)


def mlp_kernel(x_ref, cols_ref, w_hid_ref, w_out_ref, o_ref):
    """One (1, tile_n) batch tile, batch-on-lanes layout.

    x_ref    : (1, tile_n)     f32   input samples (input_dim == 1)
    cols_ref : (HP, L1 + 3)    f32   columns: [w_in | b_in | b_hid_0.. | b_out@row0]
    w_hid_ref: (L1, HP, HP)    bf16  hidden weights, pre-transposed (W_k^T)
    w_out_ref: (1, HP)         f32   output weights as a row (W_out^T)
    o_ref    : (1, tile_n)     f32   lane-dense output block
    """
    L1 = w_hid_ref.shape[0]           # static
    tile_n = x_ref.shape[1]
    half = tile_n // 2

    w_in = cols_ref[:, 0:1]                       # (HP, 1)
    b_in = cols_ref[:, 1:2]                       # (HP, 1)
    b_out = cols_ref[0:1, L1 + 2:L1 + 3]          # (1, 1)
    w_out = w_out_ref[...]                        # (1, HP)

    # Two independent row sub-chunks so tanh (EUP) of one chunk co-issues with
    # the next layer's MXU matmul of the other chunk (EUP is the binding unit).
    xA = x_ref[:, :half]
    xB = x_ref[:, half:]

    # Input layer (input_dim == 1): VPU outer-product broadcast + EUP tanh.
    hA = jnp.tanh(w_in * xA + b_in)               # (HP, half) f32
    hB = jnp.tanh(w_in * xB + b_in)

    # Hidden layers: bf16 MXU operands, f32 accumulate / bias / tanh.
    # Static unroll is fine at this depth (2 layers).
    # TODO(synk): switch to lax.fori_loop(..., unroll=True) if depth grows.
    for k in range(L1):
        wk = w_hid_ref[k]                         # (HP, HP) bf16
        bk = cols_ref[:, 2 + k:3 + k]             # (HP, 1)  f32
        hA = jnp.tanh(
            jnp.dot(wk, hA.astype(jnp.bfloat16),
                    preferred_element_type=jnp.float32) + bk)
        hB = jnp.tanh(
            jnp.dot(wk, hB.astype(jnp.bfloat16),
                    preferred_element_type=jnp.float32) + bk)

    # Output layer (output_dim == 1): (1, HP) @ (HP, half) -> lane-dense row.
    oA = jnp.dot(w_out, hA, preferred_element_type=jnp.float32) + b_out
    oB = jnp.dot(w_out, hB, preferred_element_type=jnp.float32) + b_out
    o_ref[:, :half] = oA.astype(o_ref.dtype)
    o_ref[:, half:] = oB.astype(o_ref.dtype)


def pad_params(w_in, b_in, w_hid, b_hid, w_out, b_out, hp=HP):
    """One-time parameter packing to the lane-dense, batch-on-lanes layout.

    Inputs (PyTorch nn.Linear semantics stored as y = x @ W + b, W = (in, out)):
      w_in : (1, H)        b_in : (H,)
      w_hid: (L1, H, H)    b_hid: (L1, H)
      w_out: (H, 1)        b_out: (1,)
    Returns:
      cols_p  : (hp, L1+3) f32  columns: w_in | b_in | b_hid_k ... | b_out@[0]
      w_hid_p : (L1, hp, hp) bf16, each layer transposed (W_k^T) for column layout
      w_out_p : (1, hp) f32     W_out^T as a row
    """
    H = w_in.shape[1]
    L1 = w_hid.shape[0]
    f32 = jnp.float32

    cols = jnp.zeros((hp, L1 + 3), f32)
    cols = cols.at[:H, 0].set(w_in.reshape(H).astype(f32))
    cols = cols.at[:H, 1].set(b_in.astype(f32))
    for k in range(L1):
        cols = cols.at[:H, 2 + k].set(b_hid[k].astype(f32))
    cols = cols.at[0, L1 + 2].set(b_out.reshape(()).astype(f32))

    w_hid_p = (jnp.zeros((L1, hp, hp), f32)
               .at[:, :H, :H].set(jnp.transpose(w_hid, (0, 2, 1)).astype(f32))
               .astype(jnp.bfloat16))
    w_out_p = jnp.zeros((1, hp), f32).at[0, :H].set(w_out.reshape(H).astype(f32))
    return cols, w_hid_p, w_out_p


@functools.partial(jax.jit, static_argnames=("tile_n",))
def mlp_forward(x, cols_p, w_hid_p, w_out_p, *, tile_n=512):
    """x: (N, 1) float32 -> (N, 1) float32.  Params packed by `pad_params`."""
    assert tile_n % 256 == 0, "tile_n must be a multiple of 256 (two lane-dense halves)"
    N = x.shape[0]
    hp, ncols = cols_p.shape
    L1 = w_hid_p.shape[0]

    n_blocks = pl.cdiv(N, tile_n)
    n_pad = n_blocks * tile_n

    # Layout plumbing outside the kernel: batch-on-lanes row, zero padded.
    x_row = jnp.zeros((1, n_pad), jnp.float32).at[0, :N].set(
        x.reshape(N).astype(jnp.float32))

    # Advisory cost hint for XLA's scheduler.
    flops = 2 * n_pad * hp * hp * L1 + 4 * n_pad * hp
    transcendentals = n_pad * hp * (L1 + 1)
    bytes_accessed = (4 * (2 * n_pad + cols_p.size + w_out_p.size)
                      + 2 * w_hid_p.size)

    out_row = pl.pallas_call(
        mlp_kernel,
        out_shape=jax.ShapeDtypeStruct((1, n_pad), jnp.float32),
        grid=(n_blocks,),
        in_specs=[
            pl.BlockSpec((1, tile_n), lambda i: (0, i)),       # x: streamed per tile
            pl.BlockSpec((hp, ncols), lambda i: (0, 0)),       # packed small params
            pl.BlockSpec((L1, hp, hp), lambda i: (0, 0, 0)),   # hidden weights (bf16)
            pl.BlockSpec((1, hp), lambda i: (0, 0)),           # output-row weights
        ],
        out_specs=pl.BlockSpec((1, tile_n), lambda i: (0, i)),
        compiler_params=pltpu.CompilerParams(
            # Batch axis is fully parallel -> both TensorCores on v7x.
            dimension_semantics=("parallel",),
        ),
        cost_estimate=pl.CostEstimate(
            flops=flops,
            transcendentals=transcendentals,
            bytes_accessed=bytes_accessed,
        ),
    )(x_row, cols_p, w_hid_p, w_out_p)

    return out_row[0, :N].reshape(N, 1)


if __name__ == "__main__":
    key = jax.random.PRNGKey(0)

    # Shapes implied by the module: t is a 1-D time series -> input_dim = 1.
    N = 2000              # batch (number of time samples); pads to 2048 -> grid of 4
    input_dim = 1
    output_dim = 1
    n_hidden_layers = 3
    neurons = 32

    ks = jax.random.split(key, 8)

    # Deterministic PyTorch-Linear-style init: U(-1/sqrt(fan_in), 1/sqrt(fan_in))
    def lin_init(kw, kb, fan_in, fan_out):
        bound = 1.0 / jnp.sqrt(jnp.float32(fan_in))
        w = jax.random.uniform(kw, (fan_in, fan_out), jnp.float32, -bound, bound)
        b = jax.random.uniform(kb, (fan_out,), jnp.float32, -bound, bound)
        return w, b

    w_in, b_in = lin_init(ks[0], ks[1], input_dim, neurons)
    w_hid_list, b_hid_list = [], []
    for i in range(n_hidden_layers - 1):
        w, b = lin_init(jax.random.fold_in(ks[2], i),
                        jax.random.fold_in(ks[3], i), neurons, neurons)
        w_hid_list.append(w)
        b_hid_list.append(b)
    w_hid = jnp.stack(w_hid_list)              # (L-1, H, H)
    b_hid = jnp.stack(b_hid_list)              # (L-1, H)
    w_out, b_out = lin_init(ks[4], ks[5], neurons, output_dim)

    t = jax.random.uniform(ks[6], (N, input_dim), jnp.float32)

    # One-time (init-time) parameter packing -- hoisted out of the forward path.
    packed = pad_params(w_in, b_in, w_hid, b_hid, w_out, b_out)
    packed = jax.block_until_ready(packed)

    y = mlp_forward(t, *packed, tile_n=512)
    y = jax.block_until_ready(y)

    # Plain-JAX f32 reference (original module semantics, unpadded params).
    h = jnp.tanh(t @ w_in + b_in)
    for k in range(n_hidden_layers - 1):
        h = jnp.tanh(h @ w_hid[k] + b_hid[k])
    y_ref = h @ w_out + b_out

    assert y.shape == (N, output_dim)
    # Hidden matmuls use bf16 MXU operands -> tolerance loosened vs f32 reference.
    max_err = float(jnp.max(jnp.abs(y - y_ref)))
    assert jnp.allclose(y, y_ref, atol=2e-2, rtol=2e-2), max_err
    print("KERNEL_OK")
</pallas_src>

<mosaic_0001>
module attributes {stable_mosaic.version = 11 : i64} {
  func.func @mlp_kernel(%arg0: i32, %arg1: memref<1x512xf32, #tpu.memory_space<vmem>>, %arg2: memref<128x5xf32, #tpu.memory_space<vmem>>, %arg3: memref<2x128x128xbf16, #tpu.memory_space<vmem>>, %arg4: memref<1x128xf32, #tpu.memory_space<vmem>>, %arg5: memref<1x512xf32, #tpu.memory_space<vmem>>) attributes {dimension_semantics = [#tpu.dimension_semantics<parallel>], iteration_bounds = array<i64: 4>, scalar_prefetch = 0 : i64, scratch_operands = 0 : i64, tpu.core_type = #tpu.core_type<tc>, window_params = [{transform_indices = @transform_0, window_bounds = array<i64: 1, 512>}, {pipeline_mode = #tpu.pipeline_mode<synchronous>, transform_indices = @transform_1, window_bounds = array<i64: 128, 5>}, {pipeline_mode = #tpu.pipeline_mode<synchronous>, transform_indices = @transform_2, window_bounds = array<i64: 2, 128, 128>}, {pipeline_mode = #tpu.pipeline_mode<synchronous>, transform_indices = @transform_3, window_bounds = array<i64: 1, 128>}, {transform_indices = @transform_4, window_bounds = array<i64: 1, 512>}]} {
    %c0 = arith.constant 0 : index
    %c0_0 = arith.constant 0 : index
    %0 = vector.load %arg2[%c0, %c0_0] : memref<128x5xf32, #tpu.memory_space<vmem>>, vector<128x1xf32>
    %c0_1 = arith.constant 0 : index
    %c1 = arith.constant 1 : index
    %1 = vector.load %arg2[%c0_1, %c1] : memref<128x5xf32, #tpu.memory_space<vmem>>, vector<128x1xf32>
    %c0_2 = arith.constant 0 : index
    %c4 = arith.constant 4 : index
    %2 = vector.load %arg2[%c0_2, %c4] : memref<128x5xf32, #tpu.memory_space<vmem>>, vector<1x1xf32>
    %c0_3 = arith.constant 0 : index
    %c0_4 = arith.constant 0 : index
    %3 = vector.load %arg4[%c0_3, %c0_4] : memref<1x128xf32, #tpu.memory_space<vmem>>, vector<1x128xf32>
    %c0_5 = arith.constant 0 : index
    %c0_6 = arith.constant 0 : index
    %4 = vector.load %arg1[%c0_5, %c0_6] : memref<1x512xf32, #tpu.memory_space<vmem>>, vector<1x256xf32>
    %c0_7 = arith.constant 0 : index
    %c256 = arith.constant 256 : index
    %5 = vector.load %arg1[%c0_7, %c256] : memref<1x512xf32, #tpu.memory_space<vmem>>, vector<1x256xf32>
    %6 = vector.broadcast %0 : vector<128x1xf32> to vector<128x256xf32>
    %7 = vector.broadcast %4 : vector<1x256xf32> to vector<128x256xf32>
    %8 = arith.mulf %6, %7 : vector<128x256xf32>
    %9 = vector.broadcast %1 : vector<128x1xf32> to vector<128x256xf32>
    %10 = arith.addf %8, %9 : vector<128x256xf32>
    %11 = math.tanh %10 : vector<128x256xf32>
    %12 = vector.broadcast %0 : vector<128x1xf32> to vector<128x256xf32>
    %13 = vector.broadcast %5 : vector<1x256xf32> to vector<128x256xf32>
    %14 = arith.mulf %12, %13 : vector<128x256xf32>
    %15 = vector.broadcast %1 : vector<128x1xf32> to vector<128x256xf32>
    %16 = arith.addf %14, %15 : vector<128x256xf32>
    %17 = math.tanh %16 : vector<128x256xf32>
    %c0_8 = arith.constant 0 : index
    %c0_9 = arith.constant 0 : index
    %c0_10 = arith.constant 0 : index
    %18 = vector.load %arg3[%c0_8, %c0_9, %c0_10] : memref<2x128x128xbf16, #tpu.memory_space<vmem>>, vector<1x128x128xbf16>
    %19 = vector.shape_cast %18 : vector<1x128x128xbf16> to vector<128x128xbf16>
    %c0_11 = arith.constant 0 : index
    %c2 = arith.constant 2 : index
    %20 = vector.load %arg2[%c0_11, %c2] : memref<128x5xf32, #tpu.memory_space<vmem>>, vector<128x1xf32>
    %21 = arith.truncf %11 : vector<128x256xf32> to vector<128x256xbf16>
    %cst = arith.constant dense<0.000000e+00> : vector<128x256xf32>
    %22 = tpu.matmul %19, %21, %cst {dimension_numbers = #tpu.dot_dimension_numbers<[1], [0], [0], [1], [0, 0, 1, 1], [], []>} : vector<128x128xbf16>, vector<128x256xbf16>, vector<128x256xf32> -> vector<128x256xf32>
    %23 = vector.broadcast %20 : vector<128x1xf32> to vector<128x256xf32>
    %24 = arith.addf %22, %23 : vector<128x256xf32>
    %25 = math.tanh %24 : vector<128x256xf32>
    %26 = arith.truncf %17 : vector<128x256xf32> to vector<128x256xbf16>
    %cst_12 = arith.constant dense<0.000000e+00> : vector<128x256xf32>
    %27 = tpu.matmul %19, %26, %cst_12 {dimension_numbers = #tpu.dot_dimension_numbers<[1], [0], [0], [1], [0, 0, 1, 1], [], []>} : vector<128x128xbf16>, vector<128x256xbf16>, vector<128x256xf32> -> vector<128x256xf32>
    %28 = vector.broadcast %20 : vector<128x1xf32> to vector<128x256xf32>
    %29 = arith.addf %27, %28 : vector<128x256xf32>
    %30 = math.tanh %29 : vector<128x256xf32>
    %c1_13 = arith.constant 1 : index
    %c0_14 = arith.constant 0 : index
    %c0_15 = arith.constant 0 : index
    %31 = vector.load %arg3[%c1_13, %c0_14, %c0_15] : memref<2x128x128xbf16, #tpu.memory_space<vmem>>, vector<1x128x128xbf16>
    %32 = vector.shape_cast %31 : vector<1x128x128xbf16> to vector<128x128xbf16>
    %c0_16 = arith.constant 0 : index
    %c3 = arith.constant 3 : index
    %33 = vector.load %arg2[%c0_16, %c3] : memref<128x5xf32, #tpu.memory_space<vmem>>, vector<128x1xf32>
    %34 = arith.truncf %25 : vector<128x256xf32> to vector<128x256xbf16>
    %cst_17 = arith.constant dense<0.000000e+00> : vector<128x256xf32>
    %35 = tpu.matmul %32, %34, %cst_17 {dimension_numbers = #tpu.dot_dimension_numbers<[1], [0], [0], [1], [0, 0, 1, 1], [], []>} : vector<128x128xbf16>, vector<128x256xbf16>, vector<128x256xf32> -> vector<128x256xf32>
    %36 = vector.broadcast %33 : vector<128x1xf32> to vector<128x256xf32>
    %37 = arith.addf %35, %36 : vector<128x256xf32>
    %38 = math.tanh %37 : vector<128x256xf32>
    %39 = arith.truncf %30 : vector<128x256xf32> to vector<128x256xbf16>
    %cst_18 = arith.constant dense<0.000000e+00> : vector<128x256xf32>
    %40 = tpu.matmul %32, %39, %cst_18 {dimension_numbers = #tpu.dot_dimension_numbers<[1], [0], [0], [1], [0, 0, 1, 1], [], []>} : vector<128x128xbf16>, vector<128x256xbf16>, vector<128x256xf32> -> vector<128x256xf32>
    %41 = vector.broadcast %33 : vector<128x1xf32> to vector<128x256xf32>
    %42 = arith.addf %40, %41 : vector<128x256xf32>
    %43 = math.tanh %42 : vector<128x256xf32>
    %cst_19 = arith.constant dense<0.000000e+00> : vector<1x256xf32>
    %44 = tpu.matmul %3, %38, %cst_19 {dimension_numbers = #tpu.dot_dimension_numbers<[1], [0], [0], [1], [0, 0, 1, 1], [], []>} : vector<1x128xf32>, vector<128x256xf32>, vector<1x256xf32> -> vector<1x256xf32>
    %45 = vector.broadcast %2 : vector<1x1xf32> to vector<1x256xf32>
    %46 = arith.addf %44, %45 : vector<1x256xf32>
    %cst_20 = arith.constant dense<0.000000e+00> : vector<1x256xf32>
    %47 = tpu.matmul %3, %43, %cst_20 {dimension_numbers = #tpu.dot_dimension_numbers<[1], [0], [0], [1], [0, 0, 1, 1], [], []>} : vector<1x128xf32>, vector<128x256xf32>, vector<1x256xf32> -> vector<1x256xf32>
    %48 = vector.broadcast %2 : vector<1x1xf32> to vector<1x256xf32>
    %49 = arith.addf %47, %48 : vector<1x256xf32>
    %c0_21 = arith.constant 0 : index
    %c0_22 = arith.constant 0 : index
    %50 = vector.load %arg5[%c0_21, %c0_22] : memref<1x512xf32, #tpu.memory_space<vmem>>, vector<1x256xf32>
    tpu.vector_store %arg5[%c0_21, %c0_22], %46 {strides = array<i32>} : memref<1x512xf32, #tpu.memory_space<vmem>>, vector<1x256xf32>,
    %c0_23 = arith.constant 0 : index
    %c256_24 = arith.constant 256 : index
    %51 = vector.load %arg5[%c0_23, %c256_24] : memref<1x512xf32, #tpu.memory_space<vmem>>, vector<1x256xf32>
    tpu.vector_store %arg5[%c0_23, %c256_24], %49 {strides = array<i32>} : memref<1x512xf32, #tpu.memory_space<vmem>>, vector<1x256xf32>,
    return
  }
  func.func @transform_0(%arg0: i32) -> (i32, i32) {
    %c0_i32 = arith.constant 0 : i32
    %c0_i32_0 = arith.constant 0 : i32
    return %c0_i32, %arg0 : i32, i32
  }
  func.func @transform_1(%arg0: i32) -> (i32, i32) {
    %c0_i32 = arith.constant 0 : i32
    %c0_i32_0 = arith.constant 0 : i32
    %c0_i32_1 = arith.constant 0 : i32
    return %c0_i32, %c0_i32_0 : i32, i32
  }
  func.func @transform_2(%arg0: i32) -> (i32, i32, i32) {
    %c0_i32 = arith.constant 0 : i32
    %c0_i32_0 = arith.constant 0 : i32
    %c0_i32_1 = arith.constant 0 : i32
    %c0_i32_2 = arith.constant 0 : i32
    return %c0_i32, %c0_i32_0, %c0_i32_1 : i32, i32, i32
  }
  func.func @transform_3(%arg0: i32) -> (i32, i32) {
    %c0_i32 = arith.constant 0 : i32
    %c0_i32_0 = arith.constant 0 : i32
    %c0_i32_1 = arith.constant 0 : i32
    return %c0_i32, %c0_i32_0 : i32, i32
  }
  func.func @transform_4(%arg0: i32) -> (i32, i32) {
    %c0_i32 = arith.constant 0 : i32
    %c0_i32_0 = arith.constant 0 : i32
    return %c0_i32, %arg0 : i32, i32
  }
}

</mosaic_0001>

<llo_original>
// kernel: mlp_forward.1
$region0: #{mlp_forward.1}
  #allocation0 [shape = 'u32[]', space=smem, size = 0x4, offset = 0x4, fixed_abs, tag = 'smem constant byte address 0x4 - core index']
  #allocation1 [shape = 'u32[72,128]{1,0:T(1,128)}', space=vmem, size = 0x9000, scoped, tag = 'internal scratch']
  %s0 = inlined_call_operand.vmem [shape: f32[1,2048], index: 0, kind: input, shape index: {}]
  %s1 = inlined_call_operand.vmem [shape: f32[128,5], index: 1, kind: input, shape index: {}]
  %s2 = inlined_call_operand.vmem [shape: bf16[2,128,128], index: 2, kind: input, shape index: {}]
  %s3 = inlined_call_operand.vmem [shape: f32[1,128], index: 3, kind: input, shape index: {}]
  %s4 = inlined_call_operand.vmem [shape: f32[1,2048], index: 4, kind: output, shape index: {}]
  %s5 = sld [smem:[#allocation0]]
  $region49: #{mlp_forward.1} parent=0
    _
  %s7 = ssub.s32 1, %s5
  %s8 = scalar_select 0, %s7, %s5
  loop: start=0, step=1, limit=6
  $region2: #{mlp_forward.1} parent=0 // loop_pre_header
    _
  $region3: #{mlp_forward.1} parent=0 // loop_header
    %s10 = sphi 0, %s14
    %p11 = scmp.ge.s32.totalorder %s10, 6
    %s20 = sphi 0, %s22
    %s23 = sphi 0, %s20
    %s24 = sphi 0, %s23
    %s40 = sphi 0, %s24
    %s44 = sphi 0, %s44
    %s46 = sphi 0, %s44
    %s47 = sphi 0, %s46
    %s61 = sphi 0, %s47
    %s65 = sphi 0, %s65
    %s67 = sphi 0, %s65
    %s68 = sphi 0, %s67
    %s82 = sphi 0, %s68
    %s86 = sphi 0, %s86
    %s88 = sphi 0, %s86
    %s89 = sphi 0, %s88
    %s103 = sphi 0, %s89
    %s109 = sphi 0, %s111
    %s112 = sphi 0, %s109
    %s113 = sphi 0, %s112
    %s129 = sphi 0, %s113
  $region4: #{mlp_forward.1} parent=0 // loop_header_branch
    %13 = sbr.rel (%p11) target = $region8
  $region5: #{mlp_forward.1} parent=0 // loop_body
    %s15 = ssub.s32 %s10, 1
    %s16 = ssub.s32 %s10, 2
    %s17 = sadd.s32 %s10, 1
    %s18 = ssub.s32 %s10, %s17
    %p19 = scmp.eq.s32.totalorder %s18, 0
    %s21 = sadd.s32 %s20, 1
    %s22 = scalar_select %p19, %s20, %s21
    %p25 = pneg %p19
    %p26 = scmp.eq.s32.totalorder %s10, 3
    %p27 = por %p25, %p26
    %p28 = scmp.ne.s32.totalorder %s20, %s23
    %p29 = scmp.eq.s32.totalorder %s10, 0
    %p30 = por %p28, %p29
    %p31 = scmp.ne.s32.totalorder %s20, %s23
    %p32 = scmp.eq.s32.totalorder %s15, 3
    %p33 = por %p31, %p32
    %p34 = scmp.ne.s32.totalorder %s23, %s24
    %p35 = scmp.eq.s32.totalorder %s15, 0
    %p36 = por %p34, %p35
    %p37 = scmp.ne.s32.totalorder %s23, %s24
    %p38 = scmp.eq.s32.totalorder %s16, 3
    %p39 = por %p37, %p38
    %p41 = scmp.ne.s32.totalorder %s24, %s40
    %p42 = scmp.eq.s32.totalorder %s16, 0
    %p43 = por %p41, %p42
    %s45 = sadd.s32 %s44, 1
    %p48 = scmp.eq.s32.totalorder %s10, 3
    %p49 = scmp.ne.s32.totalorder %s44, %s46
    %p50 = scmp.eq.s32.totalorder %s10, 0
    %p51 = por %p49, %p50
    %p52 = scmp.ne.s32.totalorder %s44, %s46
    %p53 = scmp.eq.s32.totalorder %s15, 3
    %p54 = por %p52, %p53
    %p55 = scmp.ne.s32.totalorder %s46, %s47
    %p56 = scmp.eq.s32.totalorder %s15, 0
    %p57 = por %p55, %p56
    %p58 = scmp.ne.s32.totalorder %s46, %s47
    %p59 = scmp.eq.s32.totalorder %s16, 3
    %p60 = por %p58, %p59
    %p62 = scmp.ne.s32.totalorder %s47, %s61
    %p63 = scmp.eq.s32.totalorder %s16, 0
    %p64 = por %p62, %p63
    %s66 = sadd.s32 %s65, 1
    %p69 = scmp.eq.s32.totalorder %s10, 3
    %p70 = scmp.ne.s32.totalorder %s65, %s67
    %p71 = scmp.eq.s32.totalorder %s10, 0
    %p72 = por %p70, %p71
    %p73 = scmp.ne.s32.totalorder %s65, %s67
    %p74 = scmp.eq.s32.totalorder %s15, 3
    %p75 = por %p73, %p74
    %p76 = scmp.ne.s32.totalorder %s67, %s68
    %p77 = scmp.eq.s32.totalorder %s15, 0
    %p78 = por %p76, %p77
    %p79 = scmp.ne.s32.totalorder %s67, %s68
    %p80 = scmp.eq.s32.totalorder %s16, 3
    %p81 = por %p79, %p80
    %p83 = scmp.ne.s32.totalorder %s68, %s82
    %p84 = scmp.eq.s32.totalorder %s16, 0
    %p85 = por %p83, %p84
    %s87 = sadd.s32 %s86, 1
    %p90 = scmp.eq.s32.totalorder %s10, 3
    %p91 = scmp.ne.s32.totalorder %s86, %s88
    %p92 = scmp.eq.s32.totalorder %s10, 0
    %p93 = por %p91, %p92
    %p94 = scmp.ne.s32.totalorder %s86, %s88
    %p95 = scmp.eq.s32.totalorder %s15, 3
    %p96 = por %p94, %p95
    %p97 = scmp.ne.s32.totalorder %s88, %s89
    %p98 = scmp.eq.s32.totalorder %s15, 0
    %p99 = por %p97, %p98
    %p100 = scmp.ne.s32.totalorder %s88, %s89
    %p101 = scmp.eq.s32.totalorder %s16, 3
    %p102 = por %p100, %p101
    %p104 = scmp.ne.s32.totalorder %s89, %s103
    %p105 = scmp.eq.s32.totalorder %s16, 0
    %p106 = por %p104, %p105
    %s107 = ssub.s32 %s10, %s17
    %p108 = scmp.eq.s32.totalorder %s107, 0
    %s110 = sadd.s32 %s109, 1
    %s111 = scalar_select %p108, %s109, %s110
    %p114 = pneg %p108
    %p115 = scmp.eq.s32.totalorder %s10, 3
    %p116 = por %p114, %p115
    %p117 = scmp.ne.s32.totalorder %s109, %s112
    %p118 = scmp.eq.s32.totalorder %s10, 0
    %p119 = por %p117, %p118
    %p120 = scmp.ne.s32.totalorder %s109, %s112
    %p121 = scmp.eq.s32.totalorder %s15, 3
    %p122 = por %p120, %p121
    %p123 = scmp.ne.s32.totalorder %s112, %s113
    %p124 = scmp.eq.s32.totalorder %s15, 0
    %p125 = por %p123, %p124
    %p126 = scmp.ne.s32.totalorder %s112, %s113
    %p127 = scmp.eq.s32.totalorder %s16, 3
    %p128 = por %p126, %p127
    %p130 = scmp.ne.s32.totalorder %s113, %s129
    %p131 = scmp.eq.s32.totalorder %s16, 0
    %p132 = por %p130, %p131
    %p133 = scmp.le.s32.totalorder 1, %s10
    %p134 = scmp.lt.s32.totalorder %s10, 5
    %p135 = pnand %p133, %p134
    %p136 = pneg %p135
    // Predicated region
    $region9: #{mlp_forward.1} parent=5 // pred_check
      _
    $region10: #{mlp_forward.1} parent=5 // pred_check_branch
      %138 = sbr.rel (%p135) target = $region12
    $region11: #{mlp_forward.1} parent=5 // pred_region
      %s139 = ssub.s32 %s10, 1
      // Predicated region
      $region13: #{mlp_forward.1} parent=11 // pred_check
        %p140 = pneg %p57
      $region14: #{mlp_forward.1} parent=11 // pred_check_branch
        %142 = sbr.rel (%p140) target = $region16
      $region15: #{mlp_forward.1} parent=11 // pred_region
        _
      $region16: #{mlp_forward.1} parent=11 // pred_fallthru
        _
      // Predicated region
      $region17: #{mlp_forward.1} parent=11 // pred_check
        %p143 = pneg %p78
      $region18: #{mlp_forward.1} parent=11 // pred_check_branch
        %145 = sbr.rel (%p143) target = $region20
      $region19: #{mlp_forward.1} parent=11 // pred_region
        _
      $region20: #{mlp_forward.1} parent=11 // pred_fallthru
        _
      // Predicated region
      $region21: #{mlp_forward.1} parent=11 // pred_check
        %p146 = pneg %p99
      $region22: #{mlp_forward.1} parent=11 // pred_check_branch
        %148 = sbr.rel (%p146) target = $region24
      $region23: #{mlp_forward.1} parent=11 // pred_region
        _
      $region24: #{mlp_forward.1} parent=11 // pred_fallthru
        _
    $region12: #{mlp_forward.1} parent=5 // pred_fallthru
      _
    %p149 = scmp.lt.s32.totalorder %s10, 4
    // Predicated region
    $region25: #{mlp_forward.1} parent=5 // pred_check
      %p150 = pneg %p149
    $region26: #{mlp_forward.1} parent=5 // pred_check_branch
      %152 = sbr.rel (%p150) target = $region28
    $region27: #{mlp_forward.1} parent=5 // pred_region
      // Predicated region
      $region29: #{mlp_forward.1} parent=27 // pred_check
        %p153 = pneg %p30
      $region30: #{mlp_forward.1} parent=27 // pred_check_branch
        %155 = sbr.rel (%p153) target = $region32
      $region31: #{mlp_forward.1} parent=27 // pred_region
        %s156 = smul.u32 4, %s10
        %p157 = scmp.lt.s32.totalorder %s156, 15
        %s158 = scalar_select %p157, %s156, 15
        %s159 = scalar_lea.vmem %s0, %s158
        %s160 = smul.u32 4, %s10
      $region32: #{mlp_forward.1} parent=27 // pred_fallthru
        _
    $region28: #{mlp_forward.1} parent=5 // pred_fallthru
      _
    %p161 = scmp.le.s32.totalorder 1, %s10
    %p162 = scmp.lt.s32.totalorder %s10, 5
    %p163 = pnand %p161, %p162
    %p164 = pneg %p163
    // Predicated region
    $region33: #{mlp_forward.1} parent=5 // pred_check
      _
    $region34: #{mlp_forward.1} parent=5 // pred_check_branch
      %166 = sbr.rel (%p163) target = $region36
    $region35: #{mlp_forward.1} parent=5 // pred_region
      %s167 = ssub.s32 %s10, 1
      %s168 = smul.u32 4, %s15
      %p169 = scmp.lt.s32.totalorder %s168, 15
      %s170 = scalar_select %p169, %s168, 15
      %s171 = scalar_lea.vmem %s0, %s170
      %p172 = pneg %p36
      %p173 = pneg %p33
      %p174 = pneg %p57
      %p175 = pneg %p54
      %p176 = pneg %p78
      %p177 = pneg %p75
      %p178 = pneg %p99
      %p179 = pneg %p96
      %p180 = pneg %p125
      %p181 = pneg %p122
      %s182 = smul.u32 4, %s15
      %p183 = scmp.lt.s32.totalorder %s182, 15
      %s184 = scalar_select %p183, %s182, 15
      %s185 = scalar_lea.vmem %s4, %s184
      %s186 = smul.u32 4, %s15
      %p187 = scmp.lt.s32.totalorder %s186, 15
      %s188 = scalar_select %p187, %s186, 15
      %s189 = scalar_lea.vmem %s0, %s188
      %s190 = smul.u32 4, %s15
      %s191 = smul.u32 4, %s15
      %p192 = scmp.lt.s32.totalorder %s191, 15
      %s193 = scalar_select %p192, %s191, 15
      %s194 = scalar_lea.vmem %s4, %s193
      %s195 = smul.u32 4, %s15
      %v196 = vld [vmem:[%s1] sm:$0xff]
      %v197 = vld [vmem:[%s1 + $0x8] sm:$0xff]
      %v198 = vld [vmem:[%s1 + $0x10] sm:$0xff]
      %v199 = vld [vmem:[%s1 + $0x18] sm:$0xff]
      %v200 = vld [vmem:[%s1 + $0x20] sm:$0xff]
      %v201 = vld [vmem:[%s1 + $0x28] sm:$0xff]
      %v202 = vld [vmem:[%s1 + $0x30] sm:$0xff]
      %v203 = vld [vmem:[%s1 + $0x38] sm:$0xff]
      %v204 = vld [vmem:[%s1 + $0x40] sm:$0xff]
      %v205 = vld [vmem:[%s1 + $0x48] sm:$0xff]
      %v206 = vld [vmem:[%s1 + $0x50] sm:$0xff]
      %v207 = vld [vmem:[%s1 + $0x58] sm:$0xff]
      %v208 = vld [vmem:[%s1 + $0x60] sm:$0xff]
      %v209 = vld [vmem:[%s1 + $0x68] sm:$0xff]
      %v210 = vld [vmem:[%s1 + $0x70] sm:$0xff]
      %v211 = vld [vmem:[%s1 + $0x78] sm:$0xff]
      %v212 = vld [vmem:[%s1] sm:$0x1]
      %v213 = vld [vmem:[%s3] sm:$0x1]
      %v214 = vld [vmem:[%s189] sm:$0x3]
      %v215 = vld [vmem:[%s189 + $0x2] sm:$0x3]
      %217 = vset.pattern.permute.xlu0 0
      %218 = vperm.xlu0 %217, %v196
      %v219 = vpop.permute.xlu0 %218
      %222 = vset.pattern.permute.xlu0 0
      %223 = vperm.xlu0 %222, %v197
      %v224 = vpop.permute.xlu0 %223
      %227 = vset.pattern.permute.xlu0 0
      %228 = vperm.xlu0 %227, %v198
      %v229 = vpop.permute.xlu0 %228
      %232 = vset.pattern.permute.xlu0 0
      %233 = vperm.xlu0 %232, %v199
      %v234 = vpop.permute.xlu0 %233
      %237 = vset.pattern.permute.xlu0 0
      %238 = vperm.xlu0 %237, %v200
      %v239 = vpop.permute.xlu0 %238
      %242 = vset.pattern.permute.xlu0 0
      %243 = vperm.xlu0 %242, %v201
      %v244 = vpop.permute.xlu0 %243
      %247 = vset.pattern.permute.xlu0 0
      %248 = vperm.xlu0 %247, %v202
      %v249 = vpop.permute.xlu0 %248
      %252 = vset.pattern.permute.xlu0 0
      %253 = vperm.xlu0 %252, %v203
      %v254 = vpop.permute.xlu0 %253
      %257 = vset.pattern.permute.xlu0 0
      %258 = vperm.xlu0 %257, %v204
      %v259 = vpop.permute.xlu0 %258
      %262 = vset.pattern.permute.xlu0 0
      %263 = vperm.xlu0 %262, %v205
      %v264 = vpop.permute.xlu0 %263
      %267 = vset.pattern.permute.xlu0 0
      %268 = vperm.xlu0 %267, %v206
      %v269 = vpop.permute.xlu0 %268
      %272 = vset.pattern.permute.xlu0 0
      %273 = vperm.xlu0 %272, %v207
      %v274 = vpop.permute.xlu0 %273
      %277 = vset.pattern.permute.xlu0 0
      %278 = vperm.xlu0 %277, %v208
      %v279 = vpop.permute.xlu0 %278
      %282 = vset.pattern.permute.xlu0 0
      %283 = vperm.xlu0 %282, %v209
      %v284 = vpop.permute.xlu0 %283
      %287 = vset.pattern.permute.xlu0 0
      %288 = vperm.xlu0 %287, %v210
      %v289 = vpop.permute.xlu0 %288
      %292 = vset.pattern.permute.xlu0 0
      %293 = vperm.xlu0 %292, %v211
      %v294 = vpop.permute.xlu0 %293
      %v297 = vperm.slane %v214, 0
      %v298 = vperm.slane %v214, 1
      %v301 = vmul.f32 %v219, %v297
      %v302 = vmul.f32 %v219, %v298
      %v303 = vmul.f32 %v224, %v297
      %v304 = vmul.f32 %v224, %v298
      %v305 = vmul.f32 %v229, %v297
      %v306 = vmul.f32 %v229, %v298
      %v307 = vmul.f32 %v234, %v297
      %v308 = vmul.f32 %v234, %v298
      %v309 = vmul.f32 %v239, %v297
      %v310 = vmul.f32 %v239, %v298
      %v311 = vmul.f32 %v244, %v297
      %v312 = vmul.f32 %v244, %v298
      %v313 = vmul.f32 %v249, %v297
      %v314 = vmul.f32 %v249, %v298
      %v315 = vmul.f32 %v254, %v297
      %v316 = vmul.f32 %v254, %v298
      %v317 = vmul.f32 %v259, %v297
      %v318 = vmul.f32 %v259, %v298
      %v319 = vmul.f32 %v264, %v297
      %v320 = vmul.f32 %v264, %v298
      %v321 = vmul.f32 %v269, %v297
      %v322 = vmul.f32 %v269, %v298
      %v323 = vmul.f32 %v274, %v297
      %v324 = vmul.f32 %v274, %v298
      %v325 = vmul.f32 %v279, %v297
      %v326 = vmul.f32 %v279, %v298
      %v327 = vmul.f32 %v284, %v297
      %v328 = vmul.f32 %v284, %v298
      %v329 = vmul.f32 %v289, %v297
      %v330 = vmul.f32 %v289, %v298
      %v331 = vmul.f32 %v294, %v297
      %v332 = vmul.f32 %v294, %v298
      %333 = vset.pattern.permute.xlu0 1
      %334 = vperm.xlu0 %333, %v196
      %v335 = vpop.permute.xlu0 %334
      %337 = vset.pattern.permute.xlu0 1
      %338 = vperm.xlu0 %337, %v197
      %v339 = vpop.permute.xlu0 %338
      %341 = vset.pattern.permute.xlu0 1
      %342 = vperm.xlu0 %341, %v198
      %v343 = vpop.permute.xlu0 %342
      %345 = vset.pattern.permute.xlu0 1
      %346 = vperm.xlu0 %345, %v199
      %v347 = vpop.permute.xlu0 %346
      %349 = vset.pattern.permute.xlu0 1
      %350 = vperm.xlu0 %349, %v200
      %v351 = vpop.permute.xlu0 %350
      %353 = vset.pattern.permute.xlu0 1
      %354 = vperm.xlu0 %353, %v201
      %v355 = vpop.permute.xlu0 %354
      %357 = vset.pattern.permute.xlu0 1
      %358 = vperm.xlu0 %357, %v202
      %v359 = vpop.permute.xlu0 %358
      %361 = vset.pattern.permute.xlu0 1
      %362 = vperm.xlu0 %361, %v203
      %v363 = vpop.permute.xlu0 %362
      %365 = vset.pattern.permute.xlu0 1
      %366 = vperm.xlu0 %365, %v204
      %v367 = vpop.permute.xlu0 %366
      %369 = vset.pattern.permute.xlu0 1
      %370 = vperm.xlu0 %369, %v205
      %v371 = vpop.permute.xlu0 %370
      %373 = vset.pattern.permute.xlu0 1
      %374 = vperm.xlu0 %373, %v206
      %v375 = vpop.permute.xlu0 %374
      %377 = vset.pattern.permute.xlu0 1
      %378 = vperm.xlu0 %377, %v207
      %v379 = vpop.permute.xlu0 %378
      %381 = vset.pattern.permute.xlu0 1
      %382 = vperm.xlu0 %381, %v208
      %v383 = vpop.permute.xlu0 %382
      %385 = vset.pattern.permute.xlu0 1
      %386 = vperm.xlu0 %385, %v209
      %v387 = vpop.permute.xlu0 %386
      %389 = vset.pattern.permute.xlu0 1
      %390 = vperm.xlu0 %389, %v210
      %v391 = vpop.permute.xlu0 %390
      %393 = vset.pattern.permute.xlu0 1
      %394 = vperm.xlu0 %393, %v211
      %v395 = vpop.permute.xlu0 %394
      %v397 = vadd.f32 %v301, %v335
      %v398 = vadd.f32 %v302, %v335
      %v399 = vadd.f32 %v303, %v339
      %v400 = vadd.f32 %v304, %v339
      %v401 = vadd.f32 %v305, %v343
      %v402 = vadd.f32 %v306, %v343
      %v403 = vadd.f32 %v307, %v347
      %v404 = vadd.f32 %v308, %v347
      %v405 = vadd.f32 %v309, %v351
      %v406 = vadd.f32 %v310, %v351
      %v407 = vadd.f32 %v311, %v355
      %v408 = vadd.f32 %v312, %v355
      %v409 = vadd.f32 %v313, %v359
      %v410 = vadd.f32 %v314, %v359
      %v411 = vadd.f32 %v315, %v363
      %v412 = vadd.f32 %v316, %v363
      %v413 = vadd.f32 %v317, %v367
      %v414 = vadd.f32 %v318, %v367
      %v415 = vadd.f32 %v319, %v371
      %v416 = vadd.f32 %v320, %v371
      %v417 = vadd.f32 %v321, %v375
      %v418 = vadd.f32 %v322, %v375
      %v419 = vadd.f32 %v323, %v379
      %v420 = vadd.f32 %v324, %v379
      %v421 = vadd.f32 %v325, %v383
      %v422 = vadd.f32 %v326, %v383
      %v423 = vadd.f32 %v327, %v387
      %v424 = vadd.f32 %v328, %v387
      %v425 = vadd.f32 %v329, %v391
      %v426 = vadd.f32 %v330, %v391
      %v427 = vadd.f32 %v331, %v395
      %v428 = vadd.f32 %v332, %v395
      %v429 = vtanh.pop %v397
      %v430 = vtanh.pop %v398
      %v431 = vtanh.pop %v399
      %v432 = vtanh.pop %v400
      %v433 = vtanh.pop %v401
      %v434 = vtanh.pop %v402
      %v435 = vtanh.pop %v403
      %v436 = vtanh.pop %v404
      %v437 = vtanh.pop %v405
      %v438 = vtanh.pop %v406
      %v439 = vtanh.pop %v407
      %v440 = vtanh.pop %v408
      %v441 = vtanh.pop %v409
      %v442 = vtanh.pop %v410
      %v443 = vtanh.pop %v411
      %v444 = vtanh.pop %v412
      %v445 = vtanh.pop %v413
      %v446 = vtanh.pop %v414
      %v447 = vtanh.pop %v415
      %v448 = vtanh.pop %v416
      %v449 = vtanh.pop %v417
      %v450 = vtanh.pop %v418
      %v451 = vtanh.pop %v419
      %v452 = vtanh.pop %v420
      %v453 = vtanh.pop %v421
      %v454 = vtanh.pop %v422
      %v455 = vtanh.pop %v423
      %v456 = vtanh.pop %v424
      %v457 = vtanh.pop %v425
      %v458 = vtanh.pop %v426
      %v459 = vtanh.pop %v427
      %v460 = vtanh.pop %v428
      %v462 = vperm.slane %v215, 0
      %v463 = vperm.slane %v215, 1
      %v466 = vmul.f32 %v219, %v462
      %v467 = vmul.f32 %v219, %v463
      %v468 = vmul.f32 %v224, %v462
      %v469 = vmul.f32 %v224, %v463
      %v470 = vmul.f32 %v229, %v462
      %v471 = vmul.f32 %v229, %v463
      %v472 = vmul.f32 %v234, %v462
      %v473 = vmul.f32 %v234, %v463
      %v474 = vmul.f32 %v239, %v462
      %v475 = vmul.f32 %v239, %v463
      %v476 = vmul.f32 %v244, %v462
      %v477 = vmul.f32 %v244, %v463
      %v478 = vmul.f32 %v249, %v462
      %v479 = vmul.f32 %v249, %v463
      %v480 = vmul.f32 %v254, %v462
      %v481 = vmul.f32 %v254, %v463
      %v482 = vmul.f32 %v259, %v462
      %v483 = vmul.f32 %v259, %v463
      %v484 = vmul.f32 %v264, %v462
      %v485 = vmul.f32 %v264, %v463
      %v486 = vmul.f32 %v269, %v462
      %v487 = vmul.f32 %v269, %v463
      %v488 = vmul.f32 %v274, %v462
      %v489 = vmul.f32 %v274, %v463
      %v490 = vmul.f32 %v279, %v462
      %v491 = vmul.f32 %v279, %v463
      %v492 = vmul.f32 %v284, %v462
      %v493 = vmul.f32 %v284, %v463
      %v494 = vmul.f32 %v289, %v462
      %v495 = vmul.f32 %v289, %v463
      %v496 = vmul.f32 %v294, %v462
      %v497 = vmul.f32 %v294, %v463
      %v498 = vadd.f32 %v466, %v335
      %v499 = vadd.f32 %v467, %v335
      %v500 = vadd.f32 %v468, %v339
      %v501 = vadd.f32 %v469, %v339
      %v502 = vadd.f32 %v470, %v343
      %v503 = vadd.f32 %v471, %v343
      %v504 = vadd.f32 %v472, %v347
      %v505 = vadd.f32 %v473, %v347
      %v506 = vadd.f32 %v474, %v351
      %v507 = vadd.f32 %v475, %v351
      %v508 = vadd.f32 %v476, %v355
      %v509 = vadd.f32 %v477, %v355
      %v510 = vadd.f32 %v478, %v359
      %v511 = vadd.f32 %v479, %v359
      %v512 = vadd.f32 %v480, %v363
      %v513 = vadd.f32 %v481, %v363
      %v514 = vadd.f32 %v482, %v367
      %v515 = vadd.f32 %v483, %v367
      %v516 = vadd.f32 %v484, %v371
      %v517 = vadd.f32 %v485, %v371
      %v518 = vadd.f32 %v486, %v375
      %v519 = vadd.f32 %v487, %v375
      %v520 = vadd.f32 %v488, %v379
      %v521 = vadd.f32 %v489, %v379
      %v522 = vadd.f32 %v490, %v383
      %v523 = vadd.f32 %v491, %v383
      %v524 = vadd.f32 %v492, %v387
      %v525 = vadd.f32 %v493, %v387
      %v526 = vadd.f32 %v494, %v391
      %v527 = vadd.f32 %v495, %v391
      %v528 = vadd.f32 %v496, %v395
      %v529 = vadd.f32 %v497, %v395
      %v530 = vtanh.pop %v498
      %v531 = vtanh.pop %v499
      %v532 = vtanh.pop %v500
      %v533 = vtanh.pop %v501
      %v534 = vtanh.pop %v502
      %v535 = vtanh.pop %v503
      %v536 = vtanh.pop %v504
      %v537 = vtanh.pop %v505
      %v538 = vtanh.pop %v506
      %v539 = vtanh.pop %v507
      %v540 = vtanh.pop %v508
      %v541 = vtanh.pop %v509
      %v542 = vtanh.pop %v510
      %v543 = vtanh.pop %v511
      %v544 = vtanh.pop %v512
      %v545 = vtanh.pop %v513
      %v546 = vtanh.pop %v514
      %v547 = vtanh.pop %v515
      %v548 = vtanh.pop %v516
      %v549 = vtanh.pop %v517
      %v550 = vtanh.pop %v518
      %v551 = vtanh.pop %v519
      %v552 = vtanh.pop %v520
      %v553 = vtanh.pop %v521
      %v554 = vtanh.pop %v522
      %v555 = vtanh.pop %v523
      %v556 = vtanh.pop %v524
      %v557 = vtanh.pop %v525
      %v558 = vtanh.pop %v526
      %v559 = vtanh.pop %v527
      %v560 = vtanh.pop %v528
      %v561 = vtanh.pop %v529
      %v562 = vld [vmem:[%s2] sm:$0xf]
      %v563 = vld [vmem:[%s2 + $0x4] sm:$0xf]
      %v564 = vld [vmem:[%s2 + $0x8] sm:$0xf]
      %v565 = vld [vmem:[%s2 + $0xc] sm:$0xf]
      %v566 = vld [vmem:[%s2 + $0x10] sm:$0xf]
      %v567 = vld [vmem:[%s2 + $0x14] sm:$0xf]
      %v568 = vld [vmem:[%s2 + $0x18] sm:$0xf]
      %v569 = vld [vmem:[%s2 + $0x1c] sm:$0xf]
      %v570 = vld [vmem:[%s2 + $0x20] sm:$0xf]
      %v571 = vld [vmem:[%s2 + $0x24] sm:$0xf]
      %v572 = vld [vmem:[%s2 + $0x28] sm:$0xf]
      %v573 = vld [vmem:[%s2 + $0x2c] sm:$0xf]
      %v574 = vld [vmem:[%s2 + $0x30] sm:$0xf]
      %v575 = vld [vmem:[%s2 + $0x34] sm:$0xf]
      %v576 = vld [vmem:[%s2 + $0x38] sm:$0xf]
      %v577 = vld [vmem:[%s2 + $0x3c] sm:$0xf]
      %v578 = vpack.c.bf16 %v431, %v429
      %v579 = vpack.c.bf16 %v432, %v430
      %v580 = vpack.c.bf16 %v435, %v433
      %v581 = vpack.c.bf16 %v436, %v434
      %v582 = vpack.c.bf16 %v439, %v437
      %v583 = vpack.c.bf16 %v440, %v438
      %v584 = vpack.c.bf16 %v443, %v441
      %v585 = vpack.c.bf16 %v444, %v442
      %v586 = vpack.c.bf16 %v447, %v445
      %v587 = vpack.c.bf16 %v448, %v446
      %v588 = vpack.c.bf16 %v451, %v449
      %v589 = vpack.c.bf16 %v452, %v450
      %v590 = vpack.c.bf16 %v455, %v453
      %v591 = vpack.c.bf16 %v456, %v454
      %v592 = vpack.c.bf16 %v459, %v457
      %v593 = vpack.c.bf16 %v460, %v458
      %594 = vset.pattern.permute.xlu0 2
      %595 = vperm.xlu0 %594, %v196
      %v596 = vpop.permute.xlu0 %595
      %598 = vset.pattern.permute.xlu0 2
      %599 = vperm.xlu0 %598, %v197
      %v600 = vpop.permute.xlu0 %599
      %602 = vset.pattern.permute.xlu0 2
      %603 = vperm.xlu0 %602, %v198
      %v604 = vpop.permute.xlu0 %603
      %606 = vset.pattern.permute.xlu0 2
      %607 = vperm.xlu0 %606, %v199
      %v608 = vpop.permute.xlu0 %607
      %610 = vset.pattern.permute.xlu0 2
      %611 = vperm.xlu0 %610, %v200
      %v612 = vpop.permute.xlu0 %611
      %614 = vset.pattern.permute.xlu0 2
      %615 = vperm.xlu0 %614, %v201
      %v616 = vpop.permute.xlu0 %615
      %618 = vset.pattern.permute.xlu0 2
      %619 = vperm.xlu0 %618, %v202
      %v620 = vpop.permute.xlu0 %619
      %622 = vset.pattern.permute.xlu0 2
      %623 = vperm.xlu0 %622, %v203
      %v624 = vpop.permute.xlu0 %623
      %626 = vset.pattern.permute.xlu0 2
      %627 = vperm.xlu0 %626, %v204
      %v628 = vpop.permute.xlu0 %627
      %630 = vset.pattern.permute.xlu0 2
      %631 = vperm.xlu0 %630, %v205
      %v632 = vpop.permute.xlu0 %631
      %634 = vset.pattern.permute.xlu0 2
      %635 = vperm.xlu0 %634, %v206
      %v636 = vpop.permute.xlu0 %635
      %638 = vset.pattern.permute.xlu0 2
      %639 = vperm.xlu0 %638, %v207
      %v640 = vpop.permute.xlu0 %639
      %642 = vset.pattern.permute.xlu0 2
      %643 = vperm.xlu0 %642, %v208
      %v644 = vpop.permute.xlu0 %643
      %646 = vset.pattern.permute.xlu0 2
      %647 = vperm.xlu0 %646, %v209
      %v648 = vpop.permute.xlu0 %647
      %650 = vset.pattern.permute.xlu0 2
      %651 = vperm.xlu0 %650, %v210
      %v652 = vpop.permute.xlu0 %651
      %654 = vset.pattern.permute.xlu0 2
      %655 = vperm.xlu0 %654, %v211
      %v656 = vpop.permute.xlu0 %655
      %v674 = vunpack.c.l.b16 %v562
      %v675 = vunpack.c.l.b16 %v563
      %v676 = vunpack.c.l.b16 %v564
      %v677 = vunpack.c.l.b16 %v565
      %v678 = vunpack.c.l.b16 %v566
      %v679 = vunpack.c.l.b16 %v567
      %v680 = vunpack.c.l.b16 %v568
      %v681 = vunpack.c.l.b16 %v569
      %v682 = vunpack.c.l.b16 %v570
      %v683 = vunpack.c.l.b16 %v571
      %v684 = vunpack.c.l.b16 %v572
      %v685 = vunpack.c.l.b16 %v573
      %v686 = vunpack.c.l.b16 %v574
      %v687 = vunpack.c.l.b16 %v575
      %v688 = vunpack.c.l.b16 %v576
      %v689 = vunpack.c.l.b16 %v577
      %v690 = vpack.c.b16 %v675, %v674
      %v691 = vpack.c.b16 %v677, %v676
      %v692 = vpack.c.b16 %v679, %v678
      %v693 = vpack.c.b16 %v681, %v680
      %v694 = vpack.c.b16 %v683, %v682
      %v695 = vpack.c.b16 %v685, %v684
      %v696 = vpack.c.b16 %v687, %v686
      %v697 = vpack.c.b16 %v689, %v688
      %706 = vmatpush.bf16.msra.mxu0 %v592
      %707 = vmatpush.bf16.msra.mxu0 %v590
      %708 = vmatpush.bf16.msra.mxu0 %v588
      %709 = vmatpush.bf16.msra.mxu0 %v586
      %710 = vmatpush.bf16.msra.mxu0 %v584
      %711 = vmatpush.bf16.msra.mxu0 %v582
      %712 = vmatpush.bf16.msra.mxu0 %v580
      %713 = vmatpush.bf16.msra.mxu0 %v578
      %714 = vmatmul.bf16.gmra.mxu0 %v690
      %v715 = vpop.f32.mrf.mxu0
      %v716 = vadd.f32 %v596, %v715
      %v717 = vpop.f32.mrf.mxu0
      %v718 = vadd.f32 %v600, %v717
      %719 = vmatmul.bf16.gmra.mxu0 %v691
      %v720 = vpop.f32.mrf.mxu0
      %v721 = vadd.f32 %v604, %v720
      %v722 = vpop.f32.mrf.mxu0
      %v723 = vadd.f32 %v608, %v722
      %724 = vmatmul.bf16.gmra.mxu0 %v692
      %v725 = vpop.f32.mrf.mxu0
      %v726 = vadd.f32 %v612, %v725
      %v727 = vpop.f32.mrf.mxu0
      %v728 = vadd.f32 %v616, %v727
      %729 = vmatmul.bf16.gmra.mxu0 %v693
      %v730 = vpop.f32.mrf.mxu0
      %v731 = vadd.f32 %v620, %v730
      %v732 = vpop.f32.mrf.mxu0
      %v733 = vadd.f32 %v624, %v732
      %734 = vmatmul.bf16.gmra.mxu0 %v694
      %v735 = vpop.f32.mrf.mxu0
      %v736 = vadd.f32 %v628, %v735
      %v737 = vpop.f32.mrf.mxu0
      %v738 = vadd.f32 %v632, %v737
      %739 = vmatmul.bf16.gmra.mxu0 %v695
      %v740 = vpop.f32.mrf.mxu0
      %v741 = vadd.f32 %v636, %v740
      %v742 = vpop.f32.mrf.mxu0
      %v743 = vadd.f32 %v640, %v742
      %744 = vmatmul.bf16.gmra.mxu0 %v696
      %v745 = vpop.f32.mrf.mxu0
      %v746 = vadd.f32 %v644, %v745
      %v747 = vpop.f32.mrf.mxu0
      %v748 = vadd.f32 %v648, %v747
      %749 = vmatmul.bf16.gmra.mxu0 %v697
      %v750 = vpop.f32.mrf.mxu0
      %v751 = vadd.f32 %v652, %v750
      %v752 = vpop.f32.mrf.mxu0
      %v753 = vadd.f32 %v656, %v752
      %754 = vdwg.mxu0
      %755 = vmatpush.bf16.msra.mxu0 %v593
      %756 = vmatpush.bf16.msra.mxu0 %v591
      %757 = vmatpush.bf16.msra.mxu0 %v589
      %758 = vmatpush.bf16.msra.mxu0 %v587
      %759 = vmatpush.bf16.msra.mxu0 %v585
      %760 = vmatpush.bf16.msra.mxu0 %v583
      %761 = vmatpush.bf16.msra.mxu0 %v581
      %762 = vmatpush.bf16.msra.mxu0 %v579
      %763 = vmatmul.bf16.gmra.mxu0 %v690
      %v764 = vpop.f32.mrf.mxu0
      %v765 = vadd.f32 %v596, %v764
      %v766 = vpop.f32.mrf.mxu0
      %v767 = vadd.f32 %v600, %v766
      %768 = vmatmul.bf16.gmra.mxu0 %v691
      %v769 = vpop.f32.mrf.mxu0
      %v770 = vadd.f32 %v604, %v769
      %v771 = vpop.f32.mrf.mxu0
      %v772 = vadd.f32 %v608, %v771
      %773 = vmatmul.bf16.gmra.mxu0 %v692
      %v774 = vpop.f32.mrf.mxu0
      %v775 = vadd.f32 %v612, %v774
      %v776 = vpop.f32.mrf.mxu0
      %v777 = vadd.f32 %v616, %v776
      %778 = vmatmul.bf16.gmra.mxu0 %v693
      %v779 = vpop.f32.mrf.mxu0
      %v780 = vadd.f32 %v620, %v779
      %v781 = vpop.f32.mrf.mxu0
      %v782 = vadd.f32 %v624, %v781
      %783 = vmatmul.bf16.gmra.mxu0 %v694
      %v784 = vpop.f32.mrf.mxu0
      %v785 = vadd.f32 %v628, %v784
      %v786 = vpop.f32.mrf.mxu0
      %v787 = vadd.f32 %v632, %v786
      %788 = vmatmul.bf16.gmra.mxu0 %v695
      %v789 = vpop.f32.mrf.mxu0
      %v790 = vadd.f32 %v636, %v789
      %v791 = vpop.f32.mrf.mxu0
      %v792 = vadd.f32 %v640, %v791
      %793 = vmatmul.bf16.gmra.mxu0 %v696
      %v794 = vpop.f32.mrf.mxu0
      %v795 = vadd.f32 %v644, %v794
      %v796 = vpop.f32.mrf.mxu0
      %v797 = vadd.f32 %v648, %v796
      %798 = vmatmul.bf16.gmra.mxu0 %v697
      %v799 = vpop.f32.mrf.mxu0
      %v800 = vadd.f32 %v652, %v799
      %v801 = vpop.f32.mrf.mxu0
      %v802 = vadd.f32 %v656, %v801
      %803 = vdwg.mxu0
      %v804 = vtanh.pop %v716
      %v805 = vtanh.pop %v765
      %v806 = vtanh.pop %v718
      %v807 = vtanh.pop %v767
      %v808 = vtanh.pop %v721
      %v809 = vtanh.pop %v770
      %v810 = vtanh.pop %v723
      %v811 = vtanh.pop %v772
      %v812 = vtanh.pop %v726
      %v813 = vtanh.pop %v775
      %v814 = vtanh.pop %v728
      %v815 = vtanh.pop %v777
      %v816 = vtanh.pop %v731
      %v817 = vtanh.pop %v780
      %v818 = vtanh.pop %v733
      %v819 = vtanh.pop %v782
      %v820 = vtanh.pop %v736
      %v821 = vtanh.pop %v785
      %v822 = vtanh.pop %v738
      %v823 = vtanh.pop %v787
      %v824 = vtanh.pop %v741
      %v825 = vtanh.pop %v790
      %v826 = vtanh.pop %v743
      %v827 = vtanh.pop %v792
      %v828 = vtanh.pop %v746
      %v829 = vtanh.pop %v795
      %v830 = vtanh.pop %v748
      %v831 = vtanh.pop %v797
      %v832 = vtanh.pop %v751
      %v833 = vtanh.pop %v800
      %v834 = vtanh.pop %v753
      %v835 = vtanh.pop %v802
      %v836 = vpack.c.bf16 %v532, %v530
      %v837 = vpack.c.bf16 %v533, %v531
      %v838 = vpack.c.bf16 %v536, %v534
      %v839 = vpack.c.bf16 %v537, %v535
      %v840 = vpack.c.bf16 %v540, %v538
      %v841 = vpack.c.bf16 %v541, %v539
      %v842 = vpack.c.bf16 %v544, %v542
      %v843 = vpack.c.bf16 %v545, %v543
      %v844 = vpack.c.bf16 %v548, %v546
      %v845 = vpack.c.bf16 %v549, %v547
      %v846 = vpack.c.bf16 %v552, %v550
      %v847 = vpack.c.bf16 %v553, %v551
      %v848 = vpack.c.bf16 %v556, %v554
      %v849 = vpack.c.bf16 %v557, %v555
      %v850 = vpack.c.bf16 %v560, %v558
      %v851 = vpack.c.bf16 %v561, %v559
      %852 = vmatpush.bf16.msra.mxu0 %v850
      %853 = vmatpush.bf16.msra.mxu0 %v848
      %854 = vmatpush.bf16.msra.mxu0 %v846
      %855 = vmatpush.bf16.msra.mxu0 %v844
      %856 = vmatpush.bf16.msra.mxu0 %v842
      %857 = vmatpush.bf16.msra.mxu0 %v840
      %858 = vmatpush.bf16.msra.mxu0 %v838
      %859 = vmatpush.bf16.msra.mxu0 %v836
      %860 = vmatmul.bf16.gmra.mxu0 %v690
      %v861 = vpop.f32.mrf.mxu0
      %v862 = vadd.f32 %v596, %v861
      %v863 = vpop.f32.mrf.mxu0
      %v864 = vadd.f32 %v600, %v863
      %865 = vmatmul.bf16.gmra.mxu0 %v691
      %v866 = vpop.f32.mrf.mxu0
      %v867 = vadd.f32 %v604, %v866
      %v868 = vpop.f32.mrf.mxu0
      %v869 = vadd.f32 %v608, %v868
      %870 = vmatmul.bf16.gmra.mxu0 %v692
      %v871 = vpop.f32.mrf.mxu0
      %v872 = vadd.f32 %v612, %v871
      %v873 = vpop.f32.mrf.mxu0
      %v874 = vadd.f32 %v616, %v873
      %875 = vmatmul.bf16.gmra.mxu0 %v693
      %v876 = vpop.f32.mrf.mxu0
      %v877 = vadd.f32 %v620, %v876
      %v878 = vpop.f32.mrf.mxu0
      %v879 = vadd.f32 %v624, %v878
      %880 = vmatmul.bf16.gmra.mxu0 %v694
      %v881 = vpop.f32.mrf.mxu0
      %v882 = vadd.f32 %v628, %v881
      %v883 = vpop.f32.mrf.mxu0
      %v884 = vadd.f32 %v632, %v883
      %885 = vmatmul.bf16.gmra.mxu0 %v695
      %v886 = vpop.f32.mrf.mxu0
      %v887 = vadd.f32 %v636, %v886
      %v888 = vpop.f32.mrf.mxu0
      %v889 = vadd.f32 %v640, %v888
      %890 = vmatmul.bf16.gmra.mxu0 %v696
      %v891 = vpop.f32.mrf.mxu0
      %v892 = vadd.f32 %v644, %v891
      %v893 = vpop.f32.mrf.mxu0
      %v894 = vadd.f32 %v648, %v893
      %895 = vmatmul.bf16.gmra.mxu0 %v697
      %v896 = vpop.f32.mrf.mxu0
      %v897 = vadd.f32 %v652, %v896
      %v898 = vpop.f32.mrf.mxu0
      %v899 = vadd.f32 %v656, %v898
      %900 = vdwg.mxu0
      %901 = vmatpush.bf16.msra.mxu0 %v851
      %902 = vmatpush.bf16.msra.mxu0 %v849
      %903 = vmatpush.bf16.msra.mxu0 %v847
      %904 = vmatpush.bf16.msra.mxu0 %v845
      %905 = vmatpush.bf16.msra.mxu0 %v843
      %906 = vmatpush.bf16.msra.mxu0 %v841
      %907 = vmatpush.bf16.msra.mxu0 %v839
      %908 = vmatpush.bf16.msra.mxu0 %v837
      %909 = vmatmul.bf16.gmra.mxu0 %v690
      %v910 = vpop.f32.mrf.mxu0
      %v911 = vadd.f32 %v596, %v910
      %v912 = vpop.f32.mrf.mxu0
      %v913 = vadd.f32 %v600, %v912
      %914 = vmatmul.bf16.gmra.mxu0 %v691
      %v915 = vpop.f32.mrf.mxu0
      %v916 = vadd.f32 %v604, %v915
      %v917 = vpop.f32.mrf.mxu0
      %v918 = vadd.f32 %v608, %v917
      %919 = vmatmul.bf16.gmra.mxu0 %v692
      %v920 = vpop.f32.mrf.mxu0
      %v921 = vadd.f32 %v612, %v920
      %v922 = vpop.f32.mrf.mxu0
      %v923 = vadd.f32 %v616, %v922
      %924 = vmatmul.bf16.gmra.mxu0 %v693
      %v925 = vpop.f32.mrf.mxu0
      %v926 = vadd.f32 %v620, %v925
      %v927 = vpop.f32.mrf.mxu0
      %v928 = vadd.f32 %v624, %v927
      %929 = vmatmul.bf16.gmra.mxu0 %v694
      %v930 = vpop.f32.mrf.mxu0
      %v931 = vadd.f32 %v628, %v930
      %v932 = vpop.f32.mrf.mxu0
      %v933 = vadd.f32 %v632, %v932
      %934 = vmatmul.bf16.gmra.mxu0 %v695
      %v935 = vpop.f32.mrf.mxu0
      %v936 = vadd.f32 %v636, %v935
      %v937 = vpop.f32.mrf.mxu0
      %v938 = vadd.f32 %v640, %v937
      %939 = vmatmul.bf16.gmra.mxu0 %v696
      %v940 = vpop.f32.mrf.mxu0
      %v941 = vadd.f32 %v644, %v940
      %v942 = vpop.f32.mrf.mxu0
      %v943 = vadd.f32 %v648, %v942
      %944 = vmatmul.bf16.gmra.mxu0 %v697
      %v945 = vpop.f32.mrf.mxu0
      %v946 = vadd.f32 %v652, %v945
      %v947 = vpop.f32.mrf.mxu0
      %v948 = vadd.f32 %v656, %v947
      %949 = vdwg.mxu0
      %v950 = vtanh.pop %v862
      %v951 = vtanh.pop %v911
      %v952 = vtanh.pop %v864
      %v953 = vtanh.pop %v913
      %v954 = vtanh.pop %v867
      %v955 = vtanh.pop %v916
      %v956 = vtanh.pop %v869
      %v957 = vtanh.pop %v918
      %v958 = vtanh.pop %v872
      %v959 = vtanh.pop %v921
      %v960 = vtanh.pop %v874
      %v961 = vtanh.pop %v923
      %v962 = vtanh.pop %v877
      %v963 = vtanh.pop %v926
      %v964 = vtanh.pop %v879
      %v965 = vtanh.pop %v928
      %v966 = vtanh.pop %v882
      %v967 = vtanh.pop %v931
      %v968 = vtanh.pop %v884
      %v969 = vtanh.pop %v933
      %v970 = vtanh.pop %v887
      %v971 = vtanh.pop %v936
      %v972 = vtanh.pop %v889
      %v973 = vtanh.pop %v938
      %v974 = vtanh.pop %v892
      %v975 = vtanh.pop %v941
      %v976 = vtanh.pop %v894
      %v977 = vtanh.pop %v943
      %v978 = vtanh.pop %v897
      %v979 = vtanh.pop %v946
      %v980 = vtanh.pop %v899
      %v981 = vtanh.pop %v948
      %s982 = scalar_lea.vmem %s2, 64
      %v983 = vld [vmem:[%s982] sm:$0xf]
      %v984 = vld [vmem:[%s982 + $0x4] sm:$0xf]
      %v985 = vld [vmem:[%s982 + $0x8] sm:$0xf]
      %v986 = vld [vmem:[%s982 + $0xc] sm:$0xf]
      %v987 = vld [vmem:[%s982 + $0x10] sm:$0xf]
      %v988 = vld [vmem:[%s982 + $0x14] sm:$0xf]
      %v989 = vld [vmem:[%s982 + $0x18] sm:$0xf]
      %v990 = vld [vmem:[%s982 + $0x1c] sm:$0xf]
      %v991 = vld [vmem:[%s982 + $0x20] sm:$0xf]
      %v992 = vld [vmem:[%s982 + $0x24] sm:$0xf]
      %v993 = vld [vmem:[%s982 + $0x28] sm:$0xf]
      %v994 = vld [vmem:[%s982 + $0x2c] sm:$0xf]
      %v995 = vld [vmem:[%s982 + $0x30] sm:$0xf]
      %v996 = vld [vmem:[%s982 + $0x34] sm:$0xf]
      %v997 = vld [vmem:[%s982 + $0x38] sm:$0xf]
      %v998 = vld [vmem:[%s982 + $0x3c] sm:$0xf]
      %v999 = vpack.c.bf16 %v806, %v804
      %v1000 = vpack.c.bf16 %v807, %v805
      %v1001 = vpack.c.bf16 %v810, %v808
      %v1002 = vpack.c.bf16 %v811, %v809
      %v1003 = vpack.c.bf16 %v814, %v812
      %v1004 = vpack.c.bf16 %v815, %v813
      %v1005 = vpack.c.bf16 %v818, %v816
      %v1006 = vpack.c.bf16 %v819, %v817
      %v1007 = vpack.c.bf16 %v822, %v820
      %v1008 = vpack.c.bf16 %v823, %v821
      %v1009 = vpack.c.bf16 %v826, %v824
      %v1010 = vpack.c.bf16 %v827, %v825
      %v1011 = vpack.c.bf16 %v830, %v828
      %v1012 = vpack.c.bf16 %v831, %v829
      %v1013 = vpack.c.bf16 %v834, %v832
      %v1014 = vpack.c.bf16 %v835, %v833
      %1015 = vset.pattern.permute.xlu0 3
      %1016 = vperm.xlu0 %1015, %v196
      %v1017 = vpop.permute.xlu0 %1016
      %1019 = vset.pattern.permute.xlu0 3
      %1020 = vperm.xlu0 %1019, %v197
      %v1021 = vpop.permute.xlu0 %1020
      %1023 = vset.pattern.permute.xlu0 3
      %1024 = vperm.xlu0 %1023, %v198
      %v1025 = vpop.permute.xlu0 %1024
      %1027 = vset.pattern.permute.xlu0 3
      %1028 = vperm.xlu0 %1027, %v199
      %v1029 = vpop.permute.xlu0 %1028
      %1031 = vset.pattern.permute.xlu0 3
      %1032 = vperm.xlu0 %1031, %v200
      %v1033 = vpop.permute.xlu0 %1032
      %1035 = vset.pattern.permute.xlu0 3
      %1036 = vperm.xlu0 %1035, %v201
      %v1037 = vpop.permute.xlu0 %1036
      %1039 = vset.pattern.permute.xlu0 3
      %1040 = vperm.xlu0 %1039, %v202
      %v1041 = vpop.permute.xlu0 %1040
      %1043 = vset.pattern.permute.xlu0 3
      %1044 = vperm.xlu0 %1043, %v203
      %v1045 = vpop.permute.xlu0 %1044
      %1047 = vset.pattern.permute.xlu0 3
      %1048 = vperm.xlu0 %1047, %v204
      %v1049 = vpop.permute.xlu0 %1048
      %1051 = vset.pattern.permute.xlu0 3
      %1052 = vperm.xlu0 %1051, %v205
      %v1053 = vpop.permute.xlu0 %1052
      %1055 = vset.pattern.permute.xlu0 3
      %1056 = vperm.xlu0 %1055, %v206
      %v1057 = vpop.permute.xlu0 %1056
      %1059 = vset.pattern.permute.xlu0 3
      %1060 = vperm.xlu0 %1059, %v207
      %v1061 = vpop.permute.xlu0 %1060
      %1063 = vset.pattern.permute.xlu0 3
      %1064 = vperm.xlu0 %1063, %v208
      %v1065 = vpop.permute.xlu0 %1064
      %1067 = vset.pattern.permute.xlu0 3
      %1068 = vperm.xlu0 %1067, %v209
      %v1069 = vpop.permute.xlu0 %1068
      %1071 = vset.pattern.permute.xlu0 3
      %1072 = vperm.xlu0 %1071, %v210
      %v1073 = vpop.permute.xlu0 %1072
      %1075 = vset.pattern.permute.xlu0 3
      %1076 = vperm.xlu0 %1075, %v211
      %v1077 = vpop.permute.xlu0 %1076
      %v1095 = vunpack.c.l.b16 %v983
      %v1096 = vunpack.c.l.b16 %v984
      %v1097 = vunpack.c.l.b16 %v985
      %v1098 = vunpack.c.l.b16 %v986
      %v1099 = vunpack.c.l.b16 %v987
      %v1100 = vunpack.c.l.b16 %v988
      %v1101 = vunpack.c.l.b16 %v989
      %v1102 = vunpack.c.l.b16 %v990
      %v1103 = vunpack.c.l.b16 %v991
      %v1104 = vunpack.c.l.b16 %v992
      %v1105 = vunpack.c.l.b16 %v993
      %v1106 = vunpack.c.l.b16 %v994
      %v1107 = vunpack.c.l.b16 %v995
      %v1108 = vunpack.c.l.b16 %v996
      %v1109 = vunpack.c.l.b16 %v997
      %v1110 = vunpack.c.l.b16 %v998
      %v1111 = vpack.c.b16 %v1096, %v1095
      %v1112 = vpack.c.b16 %v1098, %v1097
      %v1113 = vpack.c.b16 %v1100, %v1099
      %v1114 = vpack.c.b16 %v1102, %v1101
      %v1115 = vpack.c.b16 %v1104, %v1103
      %v1116 = vpack.c.b16 %v1106, %v1105
      %v1117 = vpack.c.b16 %v1108, %v1107
      %v1118 = vpack.c.b16 %v1110, %v1109
      %1127 = vmatpush.bf16.msra.mxu0 %v1013
      %1128 = vmatpush.bf16.msra.mxu0 %v1011
      %1129 = vmatpush.bf16.msra.mxu0 %v1009
      %1130 = vmatpush.bf16.msra.mxu0 %v1007
      %1131 = vmatpush.bf16.msra.mxu0 %v1005
      %1132 = vmatpush.bf16.msra.mxu0 %v1003
      %1133 = vmatpush.bf16.msra.mxu0 %v1001
      %1134 = vmatpush.bf16.msra.mxu0 %v999
      %1135 = vmatmul.bf16.gmra.mxu0 %v1111
      %v1136 = vpop.f32.mrf.mxu0
      %v1137 = vadd.f32 %v1017, %v1136
      %v1138 = vpop.f32.mrf.mxu0
      %v1139 = vadd.f32 %v1021, %v1138
      %1140 = vmatmul.bf16.gmra.mxu0 %v1112
      %v1141 = vpop.f32.mrf.mxu0
      %v1142 = vadd.f32 %v1025, %v1141
      %v1143 = vpop.f32.mrf.mxu0
      %v1144 = vadd.f32 %v1029, %v1143
      %1145 = vmatmul.bf16.gmra.mxu0 %v1113
      %v1146 = vpop.f32.mrf.mxu0
      %v1147 = vadd.f32 %v1033, %v1146
      %v1148 = vpop.f32.mrf.mxu0
      %v1149 = vadd.f32 %v1037, %v1148
      %1150 = vmatmul.bf16.gmra.mxu0 %v1114
      %v1151 = vpop.f32.mrf.mxu0
      %v1152 = vadd.f32 %v1041, %v1151
      %v1153 = vpop.f32.mrf.mxu0
      %v1154 = vadd.f32 %v1045, %v1153
      %1155 = vmatmul.bf16.gmra.mxu0 %v1115
      %v1156 = vpop.f32.mrf.mxu0
      %v1157 = vadd.f32 %v1049, %v1156
      %v1158 = vpop.f32.mrf.mxu0
      %v1159 = vadd.f32 %v1053, %v1158
      %1160 = vmatmul.bf16.gmra.mxu0 %v1116
      %v1161 = vpop.f32.mrf.mxu0
      %v1162 = vadd.f32 %v1057, %v1161
      %v1163 = vpop.f32.mrf.mxu0
      %v1164 = vadd.f32 %v1061, %v1163
      %1165 = vmatmul.bf16.gmra.mxu0 %v1117
      %v1166 = vpop.f32.mrf.mxu0
      %v1167 = vadd.f32 %v1065, %v1166
      %v1168 = vpop.f32.mrf.mxu0
      %v1169 = vadd.f32 %v1069, %v1168
      %1170 = vmatmul.bf16.gmra.mxu0 %v1118
      %v1171 = vpop.f32.mrf.mxu0
      %v1172 = vadd.f32 %v1073, %v1171
      %v1173 = vpop.f32.mrf.mxu0
      %v1174 = vadd.f32 %v1077, %v1173
      %1175 = vdwg.mxu0
      %1176 = vmatpush.bf16.msra.mxu0 %v1014
      %1177 = vmatpush.bf16.msra.mxu0 %v1012
      %1178 = vmatpush.bf16.msra.mxu0 %v1010
      %1179 = vmatpush.bf16.msra.mxu0 %v1008
      %1180 = vmatpush.bf16.msra.mxu0 %v1006
      %1181 = vmatpush.bf16.msra.mxu0 %v1004
      %1182 = vmatpush.bf16.msra.mxu0 %v1002
      %1183 = vmatpush.bf16.msra.mxu0 %v1000
      %1184 = vmatmul.bf16.gmra.mxu0 %v1111
      %v1185 = vpop.f32.mrf.mxu0
      %v1186 = vadd.f32 %v1017, %v1185
      %v1187 = vpop.f32.mrf.mxu0
      %v1188 = vadd.f32 %v1021, %v1187
      %1189 = vmatmul.bf16.gmra.mxu0 %v1112
      %v1190 = vpop.f32.mrf.mxu0
      %v1191 = vadd.f32 %v1025, %v1190
      %v1192 = vpop.f32.mrf.mxu0
      %v1193 = vadd.f32 %v1029, %v1192
      %1194 = vmatmul.bf16.gmra.mxu0 %v1113
      %v1195 = vpop.f32.mrf.mxu0
      %v1196 = vadd.f32 %v1033, %v1195
      %v1197 = vpop.f32.mrf.mxu0
      %v1198 = vadd.f32 %v1037, %v1197
      %1199 = vmatmul.bf16.gmra.mxu0 %v1114
      %v1200 = vpop.f32.mrf.mxu0
      %v1201 = vadd.f32 %v1041, %v1200
      %v1202 = vpop.f32.mrf.mxu0
      %v1203 = vadd.f32 %v1045, %v1202
      %1204 = vmatmul.bf16.gmra.mxu0 %v1115
      %v1205 = vpop.f32.mrf.mxu0
      %v1206 = vadd.f32 %v1049, %v1205
      %v1207 = vpop.f32.mrf.mxu0
      %v1208 = vadd.f32 %v1053, %v1207
      %1209 = vmatmul.bf16.gmra.mxu0 %v1116
      %v1210 = vpop.f32.mrf.mxu0
      %v1211 = vadd.f32 %v1057, %v1210
      %v1212 = vpop.f32.mrf.mxu0
      %v1213 = vadd.f32 %v1061, %v1212
      %1214 = vmatmul.bf16.gmra.mxu0 %v1117
      %v1215 = vpop.f32.mrf.mxu0
      %v1216 = vadd.f32 %v1065, %v1215
      %v1217 = vpop.f32.mrf.mxu0
      %v1218 = vadd.f32 %v1069, %v1217
      %1219 = vmatmul.bf16.gmra.mxu0 %v1118
      %v1220 = vpop.f32.mrf.mxu0
      %v1221 = vadd.f32 %v1073, %v1220
      %v1222 = vpop.f32.mrf.mxu0
      %v1223 = vadd.f32 %v1077, %v1222
      %1224 = vdwg.mxu0
      %v1225 = vtanh.pop %v1137
      %v1226 = vtanh.pop %v1186
      %v1227 = vtanh.pop %v1139
      %v1228 = vtanh.pop %v1188
      %v1229 = vtanh.pop %v1142
      %v1230 = vtanh.pop %v1191
      %v1231 = vtanh.pop %v1144
      %v1232 = vtanh.pop %v1193
      %v1233 = vtanh.pop %v1147
      %v1234 = vtanh.pop %v1196
      %v1235 = vtanh.pop %v1149
      %v1236 = vtanh.pop %v1198
      %v1237 = vtanh.pop %v1152
      %v1238 = vtanh.pop %v1201
      %v1239 = vtanh.pop %v1154
      %v1240 = vtanh.pop %v1203
      %v1241 = vtanh.pop %v1157
      %v1242 = vtanh.pop %v1206
      %v1243 = vtanh.pop %v1159
      %v1244 = vtanh.pop %v1208
      %v1245 = vtanh.pop %v1162
      %v1246 = vtanh.pop %v1211
      %v1247 = vtanh.pop %v1164
      %v1248 = vtanh.pop %v1213
      %v1249 = vtanh.pop %v1167
      %v1250 = vtanh.pop %v1216
      %v1251 = vtanh.pop %v1169
      %v1252 = vtanh.pop %v1218
      %v1253 = vtanh.pop %v1172
      %v1254 = vtanh.pop %v1221
      %v1255 = vtanh.pop %v1174
      %v1256 = vtanh.pop %v1223
      %v1257 = vpack.c.bf16 %v952, %v950
      %v1258 = vpack.c.bf16 %v953, %v951
      %v1259 = vpack.c.bf16 %v956, %v954
      %v1260 = vpack.c.bf16 %v957, %v955
      %v1261 = vpack.c.bf16 %v960, %v958
      %v1262 = vpack.c.bf16 %v961, %v959
      %v1263 = vpack.c.bf16 %v964, %v962
      %v1264 = vpack.c.bf16 %v965, %v963
      %v1265 = vpack.c.bf16 %v968, %v966
      %v1266 = vpack.c.bf16 %v969, %v967
      %v1267 = vpack.c.bf16 %v972, %v970
      %v1268 = vpack.c.bf16 %v973, %v971
      %v1269 = vpack.c.bf16 %v976, %v974
      %v1270 = vpack.c.bf16 %v977, %v975
      %v1271 = vpack.c.bf16 %v980, %v978
      %v1272 = vpack.c.bf16 %v981, %v979
      %1273 = vmatpush.bf16.msra.mxu0 %v1271
      %1274 = vmatpush.bf16.msra.mxu0 %v1269
      %1275 = vmatpush.bf16.msra.mxu0 %v1267
      %1276 = vmatpush.bf16.msra.mxu0 %v1265
      %1277 = vmatpush.bf16.msra.mxu0 %v1263
      %1278 = vmatpush.bf16.msra.mxu0 %v1261
      %1279 = vmatpush.bf16.msra.mxu0 %v1259
      %1280 = vmatpush.bf16.msra.mxu0 %v1257
      %1281 = vmatmul.bf16.gmra.mxu0 %v1111
      %v1282 = vpop.f32.mrf.mxu0
      %v1283 = vadd.f32 %v1017, %v1282
      %v1284 = vpop.f32.mrf.mxu0
      %v1285 = vadd.f32 %v1021, %v1284
      %1286 = vmatmul.bf16.gmra.mxu0 %v1112
      %v1287 = vpop.f32.mrf.mxu0
      %v1288 = vadd.f32 %v1025, %v1287
      %v1289 = vpop.f32.mrf.mxu0
      %v1290 = vadd.f32 %v1029, %v1289
      %1291 = vmatmul.bf16.gmra.mxu0 %v1113
      %v1292 = vpop.f32.mrf.mxu0
      %v1293 = vadd.f32 %v1033, %v1292
      %v1294 = vpop.f32.mrf.mxu0
      %v1295 = vadd.f32 %v1037, %v1294
      %1296 = vmatmul.bf16.gmra.mxu0 %v1114
      %v1297 = vpop.f32.mrf.mxu0
      %v1298 = vadd.f32 %v1041, %v1297
      %v1299 = vpop.f32.mrf.mxu0
      %v1300 = vadd.f32 %v1045, %v1299
      %1301 = vmatmul.bf16.gmra.mxu0 %v1115
      %v1302 = vpop.f32.mrf.mxu0
      %v1303 = vadd.f32 %v1049, %v1302
      %v1304 = vpop.f32.mrf.mxu0
      %v1305 = vadd.f32 %v1053, %v1304
      %1306 = vmatmul.bf16.gmra.mxu0 %v1116
      %v1307 = vpop.f32.mrf.mxu0
      %v1308 = vadd.f32 %v1057, %v1307
      %v1309 = vpop.f32.mrf.mxu0
      %v1310 = vadd.f32 %v1061, %v1309
      %1311 = vmatmul.bf16.gmra.mxu0 %v1117
      %v1312 = vpop.f32.mrf.mxu0
      %v1313 = vadd.f32 %v1065, %v1312
      %v1314 = vpop.f32.mrf.mxu0
      %v1315 = vadd.f32 %v1069, %v1314
      %1316 = vmatmul.bf16.gmra.mxu0 %v1118
      %v1317 = vpop.f32.mrf.mxu0
      %v1318 = vadd.f32 %v1073, %v1317
      %v1319 = vpop.f32.mrf.mxu0
      %v1320 = vadd.f32 %v1077, %v1319
      %1321 = vdwg.mxu0
      %1322 = vmatpush.bf16.msra.mxu0 %v1272
      %1323 = vmatpush.bf16.msra.mxu0 %v1270
      %1324 = vmatpush.bf16.msra.mxu0 %v1268
      %1325 = vmatpush.bf16.msra.mxu0 %v1266
      %1326 = vmatpush.bf16.msra.mxu0 %v1264
      %1327 = vmatpush.bf16.msra.mxu0 %v1262
      %1328 = vmatpush.bf16.msra.mxu0 %v1260
      %1329 = vmatpush.bf16.msra.mxu0 %v1258
      %1330 = vmatmul.bf16.gmra.mxu0 %v1111
      %v1331 = vpop.f32.mrf.mxu0
      %v1332 = vadd.f32 %v1017, %v1331
      %v1333 = vpop.f32.mrf.mxu0
      %v1334 = vadd.f32 %v1021, %v1333
      %1335 = vmatmul.bf16.gmra.mxu0 %v1112
      %v1336 = vpop.f32.mrf.mxu0
      %v1337 = vadd.f32 %v1025, %v1336
      %v1338 = vpop.f32.mrf.mxu0
      %v1339 = vadd.f32 %v1029, %v1338
      %1340 = vmatmul.bf16.gmra.mxu0 %v1113
      %v1341 = vpop.f32.mrf.mxu0
      %v1342 = vadd.f32 %v1033, %v1341
      %v1343 = vpop.f32.mrf.mxu0
      %v1344 = vadd.f32 %v1037, %v1343
      %1345 = vmatmul.bf16.gmra.mxu0 %v1114
      %v1346 = vpop.f32.mrf.mxu0
      %v1347 = vadd.f32 %v1041, %v1346
      %v1348 = vpop.f32.mrf.mxu0
      %v1349 = vadd.f32 %v1045, %v1348
      %1350 = vmatmul.bf16.gmra.mxu0 %v1115
      %v1351 = vpop.f32.mrf.mxu0
      %v1352 = vadd.f32 %v1049, %v1351
      %v1353 = vpop.f32.mrf.mxu0
      %v1354 = vadd.f32 %v1053, %v1353
      %1355 = vmatmul.bf16.gmra.mxu0 %v1116
      %v1356 = vpop.f32.mrf.mxu0
      %v1357 = vadd.f32 %v1057, %v1356
      %v1358 = vpop.f32.mrf.mxu0
      %v1359 = vadd.f32 %v1061, %v1358
      %1360 = vmatmul.bf16.gmra.mxu0 %v1117
      %v1361 = vpop.f32.mrf.mxu0
      %v1362 = vadd.f32 %v1065, %v1361
      %v1363 = vpop.f32.mrf.mxu0
      %v1364 = vadd.f32 %v1069, %v1363
      %1365 = vmatmul.bf16.gmra.mxu0 %v1118
      %v1366 = vpop.f32.mrf.mxu0
      %v1367 = vadd.f32 %v1073, %v1366
      %v1368 = vpop.f32.mrf.mxu0
      %v1369 = vadd.f32 %v1077, %v1368
      %1370 = vdwg.mxu0
      %v1371 = vtanh.pop %v1283
      %v1372 = vtanh.pop %v1332
      %v1373 = vtanh.pop %v1285
      %v1374 = vtanh.pop %v1334
      %v1375 = vtanh.pop %v1288
      %v1376 = vtanh.pop %v1337
      %v1377 = vtanh.pop %v1290
      %v1378 = vtanh.pop %v1339
      %v1379 = vtanh.pop %v1293
      %v1380 = vtanh.pop %v1342
      %v1381 = vtanh.pop %v1295
      %v1382 = vtanh.pop %v1344
      %v1383 = vtanh.pop %v1298
      %v1384 = vtanh.pop %v1347
      %v1385 = vtanh.pop %v1300
      %v1386 = vtanh.pop %v1349
      %v1387 = vtanh.pop %v1303
      %v1388 = vtanh.pop %v1352
      %v1389 = vtanh.pop %v1305
      %v1390 = vtanh.pop %v1354
      %v1391 = vtanh.pop %v1308
      %v1392 = vtanh.pop %v1357
      %v1393 = vtanh.pop %v1310
      %v1394 = vtanh.pop %v1359
      %v1395 = vtanh.pop %v1313
      %v1396 = vtanh.pop %v1362
      %v1397 = vtanh.pop %v1315
      %v1398 = vtanh.pop %v1364
      %v1399 = vtanh.pop %v1318
      %v1400 = vtanh.pop %v1367
      %v1401 = vtanh.pop %v1320
      %v1402 = vtanh.pop %v1369
      %1404 = vset.pattern.permute.xlu0 4
      %1405 = vperm.xlu0 %1404, %v212
      %v1406 = vpop.permute.xlu0 %1405
      %1408 = vmatpush.msra.mxu0 %v1255
      %1409 = vmatpush.msra.mxu0 %v1253
      %1410 = vmatpush.msra.mxu0 %v1251
      %1411 = vmatpush.msra.mxu0 %v1249
      %1412 = vmatpush.msra.mxu0 %v1247
      %1413 = vmatpush.msra.mxu0 %v1245
      %1414 = vmatpush.msra.mxu0 %v1243
      %1415 = vmatpush.msra.mxu0 %v1241
      %1416 = vmatpush.msra.mxu0 %v1239
      %1417 = vmatpush.msra.mxu0 %v1237
      %1418 = vmatpush.msra.mxu0 %v1235
      %1419 = vmatpush.msra.mxu0 %v1233
      %1420 = vmatpush.msra.mxu0 %v1231
      %1421 = vmatpush.msra.mxu0 %v1229
      %1422 = vmatpush.msra.mxu0 %v1227
      %1423 = vmatpush.msra.mxu0 %v1225
      %1424 = vmatmul.f32.gmra.mxu0 %v213
      %v1425 = vpop.f32.mrf.mxu0
      %v1426 = vadd.f32 %v1406, %v1425
      %1427 = vdwg.mxu0
      %1428 = vmatpush.msra.mxu0 %v1256
      %1429 = vmatpush.msra.mxu0 %v1254
      %1430 = vmatpush.msra.mxu0 %v1252
      %1431 = vmatpush.msra.mxu0 %v1250
      %1432 = vmatpush.msra.mxu0 %v1248
      %1433 = vmatpush.msra.mxu0 %v1246
      %1434 = vmatpush.msra.mxu0 %v1244
      %1435 = vmatpush.msra.mxu0 %v1242
      %1436 = vmatpush.msra.mxu0 %v1240
      %1437 = vmatpush.msra.mxu0 %v1238
      %1438 = vmatpush.msra.mxu0 %v1236
      %1439 = vmatpush.msra.mxu0 %v1234
      %1440 = vmatpush.msra.mxu0 %v1232
      %1441 = vmatpush.msra.mxu0 %v1230
      %1442 = vmatpush.msra.mxu0 %v1228
      %1443 = vmatpush.msra.mxu0 %v1226
      %1444 = vmatmul.f32.gmra.mxu0 %v213
      %v1445 = vpop.f32.mrf.mxu0
      %v1446 = vadd.f32 %v1406, %v1445
      %1447 = vdwg.mxu0
      %1448 = vmatpush.msra.mxu0 %v1401
      %1449 = vmatpush.msra.mxu0 %v1399
      %1450 = vmatpush.msra.mxu0 %v1397
      %1451 = vmatpush.msra.mxu0 %v1395
      %1452 = vmatpush.msra.mxu0 %v1393
      %1453 = vmatpush.msra.mxu0 %v1391
      %1454 = vmatpush.msra.mxu0 %v1389
      %1455 = vmatpush.msra.mxu0 %v1387
      %1456 = vmatpush.msra.mxu0 %v1385
      %1457 = vmatpush.msra.mxu0 %v1383
      %1458 = vmatpush.msra.mxu0 %v1381
      %1459 = vmatpush.msra.mxu0 %v1379
      %1460 = vmatpush.msra.mxu0 %v1377
      %1461 = vmatpush.msra.mxu0 %v1375
      %1462 = vmatpush.msra.mxu0 %v1373
      %1463 = vmatpush.msra.mxu0 %v1371
      %1464 = vmatmul.f32.gmra.mxu0 %v213
      %v1465 = vpop.f32.mrf.mxu0
      %v1466 = vadd.f32 %v1406, %v1465
      %1467 = vdwg.mxu0
      %1468 = vmatpush.msra.mxu0 %v1402
      %1469 = vmatpush.msra.mxu0 %v1400
      %1470 = vmatpush.msra.mxu0 %v1398
      %1471 = vmatpush.msra.mxu0 %v1396
      %1472 = vmatpush.msra.mxu0 %v1394
      %1473 = vmatpush.msra.mxu0 %v1392
      %1474 = vmatpush.msra.mxu0 %v1390
      %1475 = vmatpush.msra.mxu0 %v1388
      %1476 = vmatpush.msra.mxu0 %v1386
      %1477 = vmatpush.msra.mxu0 %v1384
      %1478 = vmatpush.msra.mxu0 %v1382
      %1479 = vmatpush.msra.mxu0 %v1380
      %1480 = vmatpush.msra.mxu0 %v1378
      %1481 = vmatpush.msra.mxu0 %v1376
      %1482 = vmatpush.msra.mxu0 %v1374
      %1483 = vmatpush.msra.mxu0 %v1372
      %1484 = vmatmul.f32.gmra.mxu0 %v213
      %v1485 = vpop.f32.mrf.mxu0
      %v1486 = vadd.f32 %v1406, %v1485
      %1487 = vdwg.mxu0
      %v1490 = vrot.slane %v1446, 7
      %vm1491 = vcmask 1040384
      %v1492 = vsel %vm1491, %v1426, %v1490
      %v1494 = vlaneseq
      %vm1495 = vcmp.ge.s32.totalorder %v1494, 0
      %vm1496 = vcmp.lt.s32.totalorder %v1494, 256
      %vm1497 = vmand %vm1495, %vm1496
      %1498 = vst.msk [vmem:[%s194] sm:$0x3] %vm1497, %v1492
      %v1501 = vrot.slane %v1486, 7
      %v1502 = vsel %vm1491, %v1466, %v1501
      %1504 = vst.msk [vmem:[%s194 + $0x2] sm:$0x3] %vm1497, %v1502
      %s1505 = smul.u32 4, %s15
      %p1506 = scmp.lt.s32.totalorder %s1505, 15
      %s1507 = scalar_select %p1506, %s1505, 15
      %s1508 = scalar_lea.vmem %s4, %s1507
      // Predicated region
      $region37: #{mlp_forward.1} parent=35 // pred_check
        %p1509 = pneg %p122
      $region38: #{mlp_forward.1} parent=35 // pred_check_branch
        %1511 = sbr.rel (%p1509) target = $region40
      $region39: #{mlp_forward.1} parent=35 // pred_region
        %s1512 = smul.u32 4, %s15
      $region40: #{mlp_forward.1} parent=35 // pred_fallthru
        _
    $region36: #{mlp_forward.1} parent=5 // pred_fallthru
      _
    %p1513 = scmp.le.s32.totalorder 2, %s10
    // Predicated region
    $region41: #{mlp_forward.1} parent=5 // pred_check
      %p1514 = pneg %p1513
    $region42: #{mlp_forward.1} parent=5 // pred_check_branch
      %1516 = sbr.rel (%p1514) target = $region44
    $region43: #{mlp_forward.1} parent=5 // pred_region
      %s1517 = ssub.s32 %s10, 2
      // Predicated region
      $region45: #{mlp_forward.1} parent=43 // pred_check
        %p1518 = pneg %p128
      $region46: #{mlp_forward.1} parent=43 // pred_check_branch
        %1520 = sbr.rel (%p1518) target = $region48
      $region47: #{mlp_forward.1} parent=43 // pred_region
        %s1521 = smul.u32 4, %s16
        %p1522 = scmp.lt.s32.totalorder %s1521, 15
        %s1523 = scalar_select %p1522, %s1521, 15
        %s1524 = scalar_lea.vmem %s4, %s1523
      $region48: #{mlp_forward.1} parent=43 // pred_fallthru
        _
    $region44: #{mlp_forward.1} parent=5 // pred_fallthru
      _
  $region6: #{mlp_forward.1} parent=0 // loop_footer
    %s14 = sadd.s32 1, %s10
  $region7: #{mlp_forward.1} parent=0 // loop_footer_branch
    %9 = sbr.rel target = $region3
  $region8: #{mlp_forward.1} parent=0 // loop_exit
    _

</llo_original>
